<compile_context>
chip_gen: v7x
topology: tpu7x:2x2x1
jax: 0.10.0
libtpu: 0.0.40
codegen_flags: <defaults>
</compile_context>

<pallas_src>
import jax
import jax.numpy as jnp
from jax.experimental import pallas as pl
from jax.experimental.pallas import tpu as pltpu


def _top1_max_kernel(x_ref, d_ref, out_ref):
    i = pl.program_id(0)
    tile_m, n = x_ref.shape            # block is (TILE_M, N); the logit matrix is (N, N)

    x = x_ref[...].astype(jnp.float32)        # (TILE_M, N)  full row slab
    dblk = d_ref[...].astype(jnp.float32)     # (TILE_M, TILE_M)  diagonal block (i, i)

    # Row-wise numerically-stable softmax pieces (dim=1).
    m = jnp.max(x, axis=1, keepdims=True)                                   # (TILE_M, 1)
    e = jnp.exp(x - m)                                                      # (TILE_M, N), <= 1
    inv_denom = pl.reciprocal(jnp.sum(e, axis=1, keepdims=True), approx=False)

    # Diagonal of each (global) row, extracted from the small diagonal block only.
    lr = jax.lax.broadcasted_iota(jnp.int32, (tile_m, tile_m), 0)
    lc = jax.lax.broadcasted_iota(jnp.int32, (tile_m, tile_m), 1)
    diag = jnp.sum(jnp.where(lr == lc, dblk, 0.0), axis=1, keepdims=True)   # (TILE_M, 1)

    # sigmoid(x - diag), reusing the softmax exponentials (no extra full-width exp):
    #   sigmoid(x - diag) = exp(x - m) / (exp(diag - m) + exp(x - m))
    e_diag = jnp.exp(diag - m)                                              # (TILE_M, 1), <= 1
    sig_diff = e * pl.reciprocal(e_diag + e, approx=False)

    # sigmoid(x^2) in tanh form: a single EUP op per element.
    sig_sq = 0.5 * (jnp.tanh(0.5 * (x * x)) + 1.0)

    val = (e * inv_denom) * (sig_diff + sig_sq)              # softmax * (sig_diff + sig_sq)
    row_sum = jnp.sum(val, axis=1, keepdims=True)            # (TILE_M, 1)

    # Tail-row masking only when the grid is not row-aligned (trace-time constant),
    # applied to the per-row partial sums instead of full-width values.
    if n % tile_m != 0:
        global_row = jax.lax.broadcasted_iota(jnp.int32, (tile_m, 1), 0) + i * tile_m
        row_sum = jnp.where(global_row < n, row_sum, 0.0)

    total = jnp.sum(row_sum, axis=0, keepdims=True)          # (1, 1) block partial sum
    out_ref[...] = total.reshape(1, 1, 1)


def _vmem_capacity_bytes() -> int:
    try:
        return int(pltpu.get_tpu_info().vmem_capacity_bytes)
    except Exception:
        # Unknown part / tracing off-device: assume the small (v7x-like) budget.
        return 64 * 1024 * 1024


def _pick_tile_m(n: int, itemsize: int) -> int:
    """Row-tile size.  Single block when it fits; otherwise the largest multiple of
    128 rows whose slab cost (2 DMA buffers in the input dtype + ~6 live full-width
    f32 intermediates) stays inside a generation-gated VMEM budget."""
    big_vmem = _vmem_capacity_bytes() >= 96 * 1024 * 1024     # v5e / v6e: 128 MiB parts
    budget = (72 if big_vmem else 24) * 1024 * 1024           # v7x: 64 MiB, 2 TCs share
    per_row = (2 * itemsize + 6 * 4) * n                      # bytes per slab row
    tile = budget // per_row
    if tile >= n:
        return n                                              # block dims == full array dims
    return max(128, (tile // 128) * 128)


def top1_max_loss(logit: jax.Array, *, tile_m=None) -> jax.Array:
    """TOP1-max loss over a square (N, N) logit matrix.  Returns a scalar (f32)."""
    assert logit.ndim == 2 and logit.shape[0] == logit.shape[1], \
        "TOP1_max expects a square logit matrix (batch of sampled scores)."
    n = logit.shape[0]
    itemsize = jnp.dtype(logit.dtype).itemsize
    if tile_m is None:
        tile_m = _pick_tile_m(n, itemsize)
    tile_m = min(tile_m, n)
    if tile_m != n:
        assert tile_m % 128 == 0, "tiled path requires tile_m to be a multiple of 128"
    n_blocks = pl.cdiv(n, tile_m)

    big_vmem = _vmem_capacity_bytes() >= 96 * 1024 * 1024
    vmem_limit = (96 if big_vmem else 48) * 1024 * 1024

    cost = pl.CostEstimate(
        flops=14 * n * n,
        transcendentals=3 * n * n,        # exp(x-m), tanh(x^2/2), recip(e_diag+e) per element
        bytes_accessed=itemsize * (n * n + n_blocks * tile_m * tile_m) + 4 * n_blocks,
    )

    partial_sums = pl.pallas_call(
        _top1_max_kernel,
        out_shape=jax.ShapeDtypeStruct((n_blocks, 1, 1), jnp.float32),
        grid_spec=pltpu.PrefetchScalarGridSpec(
            num_scalar_prefetch=0,
            grid=(n_blocks,),
            in_specs=[
                pl.BlockSpec((tile_m, n), lambda i: (i, 0)),         # full row slab
                pl.BlockSpec((tile_m, tile_m), lambda i: (i, i)),    # diagonal block
            ],
            out_specs=pl.BlockSpec((1, 1, 1), lambda i: (i, 0, 0)),  # per-block partial sum
        ),
        compiler_params=pltpu.CompilerParams(
            # Per-block partial outputs -> no cross-step state -> the row axis is
            # "parallel", letting v7x's two TensorCores split the grid.
            dimension_semantics=("parallel",),
            vmem_limit_bytes=vmem_limit,
        ),
        cost_estimate=cost,
    )(logit, logit)

    return jnp.sum(partial_sums) * jnp.float32(1.0 / (n * n))


def _reference(logit):
    # Pure-JAX reference mirroring the PyTorch forward, for sanity checking.
    logit = logit.astype(jnp.float32)
    sm = jax.nn.softmax(logit, axis=1)
    diag = jnp.diagonal(logit)[:, None]
    diff = logit - diag
    return jnp.mean(sm * (jax.nn.sigmoid(diff) + jax.nn.sigmoid(logit ** 2)))


if __name__ == "__main__":
    key = jax.random.PRNGKey(0)
    key_a, key_b = jax.random.split(key)

    # Primary: small square logit matrix (single-block path; block dims == array dims).
    logit = jax.random.normal(key_a, (16, 16), dtype=jnp.float32)
    loss = top1_max_loss(logit)
    jax.block_until_ready(loss)
    ref = _reference(logit)
    assert jnp.allclose(loss, ref, atol=1e-5, rtol=1e-5), (loss, ref)

    # Secondary: exercise the tiled path (diag-block spec, tail-row masking,
    # per-block partial outputs).  grid=(2,); the last block has 56 padded rows.
    logit2 = jax.random.normal(key_b, (200, 200), dtype=jnp.float32)
    loss2 = top1_max_loss(logit2, tile_m=128)
    jax.block_until_ready(loss2)
    ref2 = _reference(logit2)
    assert jnp.allclose(loss2, ref2, atol=1e-5, rtol=1e-5), (loss2, ref2)

    print("KERNEL_OK")
</pallas_src>

<mosaic_0001>
module attributes {stable_mosaic.version = 11 : i64} {
  func.func @_top1_max_kernel(%arg0: i32, %arg1: memref<16x16xf32, #tpu.memory_space<vmem>>, %arg2: memref<16x16xf32, #tpu.memory_space<vmem>>, %arg3: memref<1x1x1xf32, #tpu.memory_space<vmem>>) attributes {dimension_semantics = [#tpu.dimension_semantics<parallel>], iteration_bounds = array<i64: 1>, scalar_prefetch = 0 : i64, scratch_operands = 0 : i64, tpu.core_type = #tpu.core_type<tc>, window_params = [{transform_indices = @transform_0, window_bounds = array<i64: 16, 16>}, {transform_indices = @transform_1, window_bounds = array<i64: 16, 16>}, {transform_indices = @transform_2, window_bounds = array<i64: 1, 1, 1>}]} {
    %c0 = arith.constant 0 : index
    %c0_0 = arith.constant 0 : index
    %0 = vector.load %arg1[%c0, %c0_0] : memref<16x16xf32, #tpu.memory_space<vmem>>, vector<16x16xf32>
    %c0_1 = arith.constant 0 : index
    %c0_2 = arith.constant 0 : index
    %1 = vector.load %arg2[%c0_1, %c0_2] : memref<16x16xf32, #tpu.memory_space<vmem>>, vector<16x16xf32>
    %cst = arith.constant dense<0xFF800000> : vector<16xf32>
    %2 = vector.multi_reduction <maximumf>, %0, %cst [1] : vector<16x16xf32> to vector<16xf32>
    %3 = vector.shape_cast %2 : vector<16xf32> to vector<16x1xf32>
    %4 = vector.broadcast %3 : vector<16x1xf32> to vector<16x16xf32>
    %5 = arith.subf %0, %4 : vector<16x16xf32>
    %6 = math.exp %5 : vector<16x16xf32>
    %cst_3 = arith.constant dense<0.000000e+00> : vector<16xf32>
    %7 = vector.multi_reduction <add>, %6, %cst_3 [1] : vector<16x16xf32> to vector<16xf32>
    %8 = vector.shape_cast %7 : vector<16xf32> to vector<16x1xf32>
    %9 = tpu.reciprocal %8 : vector<16x1xf32> -> vector<16x1xf32>
    %10 = tpu.iota {dimensions = array<i32: 0>} : vector<16x16xi32>
    %11 = tpu.iota {dimensions = array<i32: 1>} : vector<16x16xi32>
    %12 = arith.cmpi eq, %10, %11 : vector<16x16xi32>
    %cst_4 = arith.constant 0.000000e+00 : f32
    %13 = vector.broadcast %cst_4 : f32 to vector<16x16xf32>
    %14 = arith.select %12, %1, %13 : vector<16x16xi1>, vector<16x16xf32>
    %cst_5 = arith.constant dense<0.000000e+00> : vector<16xf32>
    %15 = vector.multi_reduction <add>, %14, %cst_5 [1] : vector<16x16xf32> to vector<16xf32>
    %16 = vector.shape_cast %15 : vector<16xf32> to vector<16x1xf32>
    %17 = arith.subf %16, %3 : vector<16x1xf32>
    %18 = math.exp %17 : vector<16x1xf32>
    %19 = vector.broadcast %18 : vector<16x1xf32> to vector<16x16xf32>
    %20 = arith.addf %19, %6 : vector<16x16xf32>
    %21 = tpu.reciprocal %20 : vector<16x16xf32> -> vector<16x16xf32>
    %22 = arith.mulf %6, %21 : vector<16x16xf32>
    %23 = arith.mulf %0, %0 : vector<16x16xf32>
    %cst_6 = arith.constant 5.000000e-01 : f32
    %24 = vector.broadcast %cst_6 : f32 to vector<16x16xf32>
    %25 = arith.mulf %24, %23 : vector<16x16xf32>
    %26 = math.tanh %25 : vector<16x16xf32>
    %cst_7 = arith.constant 1.000000e+00 : f32
    %27 = vector.broadcast %cst_7 : f32 to vector<16x16xf32>
    %28 = arith.addf %26, %27 : vector<16x16xf32>
    %cst_8 = arith.constant 5.000000e-01 : f32
    %29 = vector.broadcast %cst_8 : f32 to vector<16x16xf32>
    %30 = arith.mulf %29, %28 : vector<16x16xf32>
    %31 = vector.broadcast %9 : vector<16x1xf32> to vector<16x16xf32>
    %32 = arith.mulf %6, %31 : vector<16x16xf32>
    %33 = arith.addf %22, %30 : vector<16x16xf32>
    %34 = arith.mulf %32, %33 : vector<16x16xf32>
    %cst_9 = arith.constant dense<0.000000e+00> : vector<16xf32>
    %35 = vector.multi_reduction <add>, %34, %cst_9 [1] : vector<16x16xf32> to vector<16xf32>
    %36 = vector.shape_cast %35 : vector<16xf32> to vector<16x1xf32>
    %cst_10 = arith.constant dense<0.000000e+00> : vector<1xf32>
    %37 = vector.multi_reduction <add>, %36, %cst_10 [0] : vector<16x1xf32> to vector<1xf32>
    %38 = vector.shape_cast %37 : vector<1xf32> to vector<1x1xf32>
    %39 = vector.shape_cast %38 : vector<1x1xf32> to vector<1x1x1xf32>
    %c0_11 = arith.constant 0 : index
    %c0_12 = arith.constant 0 : index
    %c0_13 = arith.constant 0 : index
    %40 = vector.load %arg3[%c0_11, %c0_12, %c0_13] : memref<1x1x1xf32, #tpu.memory_space<vmem>>, vector<1x1x1xf32>
    tpu.vector_store %arg3[%c0_11, %c0_12, %c0_13], %39 {strides = array<i32>} : memref<1x1x1xf32, #tpu.memory_space<vmem>>, vector<1x1x1xf32>,
    return
  }
  func.func @transform_0(%arg0: i32) -> (i32, i32) {
    %c0_i32 = arith.constant 0 : i32
    %c0_i32_0 = arith.constant 0 : i32
    return %arg0, %c0_i32 : i32, i32
  }
  func.func @transform_1(%arg0: i32) -> (i32, i32) {
    %c0_i32 = arith.constant 0 : i32
    return %arg0, %arg0 : i32, i32
  }
  func.func @transform_2(%arg0: i32) -> (i32, i32, i32) {
    %c0_i32 = arith.constant 0 : i32
    %c0_i32_0 = arith.constant 0 : i32
    %c0_i32_1 = arith.constant 0 : i32
    return %arg0, %c0_i32, %c0_i32_0 : i32, i32, i32
  }
}

</mosaic_0001>

<llo_original>
// kernel: tpu_custom_call.1
$region0: #{tpu_custom_call.1}
  #allocation0 [shape = 'u32[]', space=smem, size = 0x4, offset = 0x4, fixed_abs, tag = 'smem constant byte address 0x4 - core index']
  #allocation1 [shape = 'u32[144,128]{1,0:T(1,128)}', space=vmem, size = 0x12000, scoped, tag = 'internal scratch']
  %s0 = inlined_call_operand.hbm [shape: f32[16,16], index: 0, kind: input, shape index: {}]
  %s1 = inlined_call_operand.hbm [shape: f32[16,16], index: 1, kind: input, shape index: {}]
  %s2 = inlined_call_operand.hbm [shape: f32[1,1,1], index: 2, kind: output, shape index: {}]
  %s3 = sld [smem:[#allocation0]]
  $region26: #{tpu_custom_call.1} parent=0
    _
  %s5 = ssub.s32 1, %s3
  %s6 = scalar_select 0, %s5, %s3
  $region1: #{tpu_custom_call.1} parent=0
    #allocation2 [shape = 'u8[8192]{0}', space=vmem, size = 0x2000, scoped, tag = 'input window, operand 0, single buffered']
    #allocation3 [shape = 's32[1]{0}', space=sflag, size = 0x4, scoped, tag = 'scoped memory for tpu_custom_call.1']
    #allocation4 [shape = 's32[1]{0}', space=sflag, size = 0x4, scoped, tag = 'scoped memory for tpu_custom_call.1']
    #allocation5 [shape = 'u8[8192]{0}', space=vmem, size = 0x2000, scoped, tag = 'input window, operand 1, single buffered']
    #allocation6 [shape = 's32[1]{0}', space=sflag, size = 0x4, scoped, tag = 'scoped memory for tpu_custom_call.1']
    #allocation7 [shape = 'u8[512]{0}', space=vmem, size = 0x400, scoped, tag = 'output window, operand 0, single buffered']
    %7 = vsyncpa [#allocation3], 0
    %8 = vsyncpa [#allocation6], 0
    %9 = vsyncpa [#allocation4], 0
    // Predicated region
    $region2: #{tpu_custom_call.1} parent=1 // pred_check
      _
    $region3: #{tpu_custom_call.1} parent=1 // pred_check_branch
      %11 = sbr.rel (0) target = $region5
    $region4: #{tpu_custom_call.1} parent=1 // pred_region
      %s13 = ssub.s32 256, 256
      %14 = vsyncadd [#allocation3], %s13
      %s15 = sshll.u32 [#allocation2], 4
      %s16 = int_to_ptr.vmem [resolvable:$true] %s15
      %21 = dma.hbm_to_vmem [thread:$0]  %s0, 256, %s16, [#allocation3], 128, 128, 8
    $region5: #{tpu_custom_call.1} parent=1 // pred_fallthru
      _
    // Predicated region
    $region6: #{tpu_custom_call.1} parent=1 // pred_check
      _
    $region7: #{tpu_custom_call.1} parent=1 // pred_check_branch
      %23 = sbr.rel (0) target = $region9
    $region8: #{tpu_custom_call.1} parent=1 // pred_region
      %s25 = ssub.s32 256, 256
      %26 = vsyncadd [#allocation6], %s25
      %s27 = sshll.u32 [#allocation5], 4
      %s28 = int_to_ptr.vmem [resolvable:$true] %s27
      %33 = dma.hbm_to_vmem [thread:$0]  %s1, 256, %s28, [#allocation6], 128, 128, 8
    $region9: #{tpu_custom_call.1} parent=1 // pred_fallthru
      _
    // Predicated region
    $region10: #{tpu_custom_call.1} parent=1 // pred_check
      _
    $region11: #{tpu_custom_call.1} parent=1 // pred_check_branch
      %35 = sbr.rel (0) target = $region13
    $region12: #{tpu_custom_call.1} parent=1 // pred_region
      %36 = dma.done [#allocation3], 256
    $region13: #{tpu_custom_call.1} parent=1 // pred_fallthru
      _
    // Predicated region
    $region14: #{tpu_custom_call.1} parent=1 // pred_check
      _
    $region15: #{tpu_custom_call.1} parent=1 // pred_check_branch
      %38 = sbr.rel (0) target = $region17
    $region16: #{tpu_custom_call.1} parent=1 // pred_region
      %39 = dma.done [#allocation6], 256
    $region17: #{tpu_custom_call.1} parent=1 // pred_fallthru
      _
    %v40 = vld [vmem:[#allocation2] sm:$0xff]
    %v41 = vld [vmem:[#allocation2 + $0x8] sm:$0xff]
    %v42 = vld [vmem:[#allocation5] sm:$0xff]
    %v43 = vld [vmem:[#allocation5 + $0x8] sm:$0xff]
    %vm44 = vcmask 130048
    %v45 = vsel %vm44, %v40, -inf
    %46 = vmax.xlane.f32.xlu0 %v45
    %v47 = vpop.xlane.xlu0 %46
    %v48 = vsel %vm44, %v41, -inf
    %49 = vmax.xlane.f32.xlu0 %v48
    %v50 = vpop.xlane.xlu0 %49
    %v51 = vsub.f32 %v40, %v47
    %v52 = vsub.f32 %v41, %v50
    %v53 = vmul.f32 %v51, 1.442695
    %v54 = vpow.pop %v53
    %v55 = vmul.f32 %v52, 1.442695
    %v56 = vpow.pop %v55
    %v57 = vsel %vm44, %v54, 0.0
    %58 = vadd.xlane.f32.xlu0 %v57
    %v59 = vpop.xlane.xlu0 %58
    %v60 = vsel %vm44, %v56, 0.0
    %61 = vadd.xlane.f32.xlu0 %v60
    %v62 = vpop.xlane.xlu0 %61
    %v63 = vrcp.pop %v59
    %v64 = vrcp.pop %v62
    %v65 = vlaneseq
    %v66 = vshrl.u32 %v65, 7
    %v67 = vadd.s32 %v66, 8
    %v68 = vlaneseq
    %v69 = vand.u32 %v68, 127
    %vm70 = vcmp.eq.s32.totalorder %v66, %v69
    %vm71 = vcmp.eq.s32.totalorder %v67, %v69
    %v72 = vsel %vm70, %v42, 0.0
    %v73 = vsel %vm71, %v43, 0.0
    %v74 = vsel %vm44, %v72, 0.0
    %75 = vadd.xlane.f32.xlu0 %v74
    %v76 = vpop.xlane.xlu0 %75
    %v77 = vsel %vm44, %v73, 0.0
    %78 = vadd.xlane.f32.xlu0 %v77
    %v79 = vpop.xlane.xlu0 %78
    %v80 = vsub.f32 %v76, %v47
    %v81 = vsub.f32 %v79, %v50
    %v82 = vmul.f32 %v80, 1.442695
    %v83 = vpow.pop %v82
    %v84 = vmul.f32 %v81, 1.442695
    %v85 = vpow.pop %v84
    %v86 = vadd.f32 %v83, %v54
    %v87 = vadd.f32 %v85, %v56
    %v88 = vrcp.pop %v86
    %v89 = vrcp.pop %v87
    %v90 = vmul.f32 %v54, %v88
    %v91 = vmul.f32 %v56, %v89
    %v92 = vmul.f32 %v40, %v40
    %v93 = vmul.f32 %v41, %v41
    %v94 = vmul.f32 %v92, 0.5
    %v95 = vmul.f32 %v93, 0.5
    %v96 = vtanh.pop %v94
    %v97 = vtanh.pop %v95
    %v98 = vadd.f32 %v96, 1.0
    %v99 = vadd.f32 %v97, 1.0
    %v100 = vmul.f32 %v98, 0.5
    %v101 = vmul.f32 %v99, 0.5
    %v102 = vmul.f32 %v54, %v63
    %v103 = vmul.f32 %v56, %v64
    %v104 = vadd.f32 %v90, %v100
    %v105 = vadd.f32 %v91, %v101
    %v106 = vmul.f32 %v102, %v104
    %v107 = vmul.f32 %v103, %v105
    %v108 = vsel %vm44, %v106, 0.0
    %109 = vadd.xlane.f32.xlu0 %v108
    %v110 = vpop.xlane.xlu0 %109
    %v111 = vsel %vm44, %v107, 0.0
    %112 = vadd.xlane.f32.xlu0 %v111
    %v113 = vpop.xlane.xlu0 %112
    %v114 = vadd.f32 %v110, %v113
    %v115 = vrot.slane %v114, 4
    %v116 = vadd.f32 %v114, %v115
    %v117 = vrot.slane %v116, 2
    %v118 = vadd.f32 %v116, %v117
    %v119 = vrot.slane %v118, 1
    %v120 = vadd.f32 %v118, %v119
    %vm121 = vcmask 0
    %122 = vst.msk [vmem:[#allocation7] sm:$0x1] %vm121, %v120
    // Predicated region
    $region18: #{tpu_custom_call.1} parent=1 // pred_check
      _
    $region19: #{tpu_custom_call.1} parent=1 // pred_check_branch
      %124 = sbr.rel (0) target = $region21
    $region20: #{tpu_custom_call.1} parent=1 // pred_region
      %s126 = ssub.s32 16, 16
      %127 = vsyncadd [#allocation4], %s126
      %s129 = sshll.u32 [#allocation7], 4
      %s130 = int_to_ptr.vmem [resolvable:$true] %s129
      %132 = dma.vmem_to_hbm [thread:$0]  %s130, 16, %s2, [#allocation4]
    $region21: #{tpu_custom_call.1} parent=1 // pred_fallthru
      _
    // Predicated region
    $region22: #{tpu_custom_call.1} parent=1 // pred_check
      _
    $region23: #{tpu_custom_call.1} parent=1 // pred_check_branch
      %134 = sbr.rel (0) target = $region25
    $region24: #{tpu_custom_call.1} parent=1 // pred_region
      %135 = dma.done [#allocation4], 16
    $region25: #{tpu_custom_call.1} parent=1 // pred_fallthru
      _
    %136 = vsyncpa [#allocation3], 1
    %137 = vsyncpa [#allocation6], 1
    %138 = vsyncpa [#allocation4], 1

</llo_original>
